<compile_context>
chip_gen: v6e
topology: v6e:2x2x1
jax: 0.10.0
libtpu: 0.0.40
codegen_flags: <defaults>
</compile_context>

<pallas_src>
import jax
import jax.numpy as jnp
from jax.experimental import pallas as pl
from jax.experimental.pallas import tpu as pltpu


def attention_simple_kernel(ids_ref, emb_ref, wq_ref, w1_ref, b1_ref,
                            w2_ref, b2_ref, out_ref):
    ids = ids_ref[...]                                   # (TB, T) int32
    emb = emb_ref[...]                                   # (V, D)  f32
    TB, T = ids.shape
    V, D = emb.shape

    # --- Per-vocab attention scores: s[v] = emb[v,:] @ w_q  -> (1, V). ---
    scores = jax.lax.dot_general(
        wq_ref[...], emb, (((1,), (1,)), ((), ())),
        preferred_element_type=jnp.float32,
    )                                                    # (1, V) lane-major

    # --- One-hot over the vocab axis (V on lanes); shared by both gathers. ---
    # NOTE: out-of-range ids produce a zero row here, whereas PyTorch's
    # Embedding would raise (behavioral difference for invalid ids only).
    iota_v = jax.lax.broadcasted_iota(jnp.int32, (TB, T, V), 2)
    onehot = (ids.reshape(TB, T, 1) == iota_v).astype(jnp.float32)   # (TB,T,V)

    # --- x_q[b,t] = s[ids[b,t]]  (VPU multiply + lane reduce over V). ---
    xq = jnp.sum(onehot * scores.reshape(1, 1, V), axis=-1)          # (TB, T)

    # --- Softmax over the sequence axis (lane reductions, EUP exp/recip). ---
    m = jnp.max(xq, axis=-1, keepdims=True)              # (TB, 1)
    e = jnp.exp(xq - m)                                  # (TB, T)
    att = e * pl.reciprocal(jnp.sum(e, axis=-1, keepdims=True), approx=True)

    # --- Fold attention into the one-hot, then ONE small MXU pass:
    #     x = (sum_t att[b,t] * onehot[b,t,:]) @ emb                  (TB, D)
    w_oh = jnp.sum(onehot * att.reshape(TB, T, 1), axis=1)           # (TB, V)
    xs = jnp.dot(w_oh, emb, preferred_element_type=jnp.float32)      # (TB, D)

    # --- MLP: Linear -> ReLU -> Linear (O=1, lane-dense) -> Sigmoid. ---
    h = jnp.maximum(
        jnp.dot(xs, w1_ref[...], preferred_element_type=jnp.float32)
        + b1_ref[...],
        0.0,
    )                                                    # (TB, H)
    # (1, H) x (TB, H) contracted over H -> (1, TB): lane-dense logits,
    # so the final store is an unmasked lane-major slab.
    logits = jax.lax.dot_general(
        w2_ref[...], h, (((1,), (1,)), ((), ())),
        preferred_element_type=jnp.float32,
    ) + b2_ref[...]                                      # (1, TB)
    sig = pl.reciprocal(1.0 + jnp.exp(-logits), approx=True)
    out_ref[...] = sig.reshape(1, 1, TB).astype(out_ref.dtype)


def _round_up(x, m):
    return (x + m - 1) // m * m


def attention_simple_forward(x_ids, embeddings, w_q, w1, b1, w2, b2, *, tile_b=None):
    """x_ids: (B, T) int32 token ids.  Weights are (in_features, out_features)."""
    B, T = x_ids.shape
    V, D = embeddings.shape
    O = w_q.shape[1]
    H = w1.shape[1]

    # The PyTorch broadcast `attention * x_k` is only well-defined for O == 1
    # (the TP's configuration) -- enforce it statically.
    if O != 1:
        raise ValueError(f"AttentionSimple requires output_size == 1, got O={O}")

    if tile_b is None:
        # Sublane-aligned batch tile.  256 rows keeps 2x-buffered inputs and
        # in-kernel temporaries well under the scoped-VMEM default on every
        # generation (incl. v7x's 64 MiB physical / 32 MiB scoped).
        tile_b = min(256, _round_up(B, 8))
    tile_b = max(8, _round_up(tile_b, 8))
    B_pad = _round_up(B, tile_b)
    num_tiles = B_pad // tile_b

    if B_pad != B:
        # Pad with token id 0 (a valid row); padded rows are dropped below.
        x_ids = jnp.pad(x_ids, ((0, B_pad - B), (0, 0)))

    wq_row = w_q.T.reshape(O, D)            # (1, D) lane-major
    w2_row = w2.T.reshape(O, H)             # (1, H) lane-major
    b1_row = b1.reshape(1, H)
    b2_row = b2.reshape(1, 1)

    cost = pl.CostEstimate(
        flops=int(2 * num_tiles * V * D          # per-vocab scores
                  + 4 * B_pad * T * V            # one-hot gather + fold
                  + 2 * B_pad * V * D            # weighted one-hot @ emb
                  + 2 * B_pad * D * H            # MLP layer 1
                  + 2 * B_pad * H),              # MLP layer 2 (O=1)
        transcendentals=int(B_pad * T + 2 * B_pad),
        bytes_accessed=int(x_ids.nbytes + embeddings.nbytes + wq_row.nbytes
                           + w1.nbytes + b1_row.nbytes + w2_row.nbytes
                           + b2_row.nbytes + B_pad * 4),
    )

    out = pl.pallas_call(
        attention_simple_kernel,
        out_shape=jax.ShapeDtypeStruct((num_tiles, 1, tile_b), jnp.float32),
        grid=(num_tiles,),
        in_specs=[
            pl.BlockSpec((tile_b, T), lambda i: (i, 0)),   # token ids
            pl.BlockSpec((V, D), lambda i: (0, 0)),        # embedding table
            pl.BlockSpec((O, D), lambda i: (0, 0)),        # W_q^T
            pl.BlockSpec((D, H), lambda i: (0, 0)),        # W1
            pl.BlockSpec((1, H), lambda i: (0, 0)),        # b1
            pl.BlockSpec((O, H), lambda i: (0, 0)),        # W2^T
            pl.BlockSpec((1, 1), lambda i: (0, 0)),        # b2
        ],
        out_specs=pl.BlockSpec((1, 1, tile_b), lambda i: (i, 0, 0)),
        compiler_params=pltpu.CompilerParams(
            dimension_semantics=("parallel",)),
        cost_estimate=cost,
    )(x_ids, embeddings, wq_row, w1, b1_row, w2_row, b2_row)

    # (num_tiles, 1, tile_b) lane-dense slab -> (B, O)
    return out.reshape(B_pad)[:B].reshape(B, O)


def _reference(x_ids, embeddings, w_q, w1, b1, w2, b2):
    x_k = jnp.take(embeddings, x_ids, axis=0)
    x_q = x_k @ w_q
    att = jax.nn.softmax(x_q, axis=1)
    xs = jnp.sum(att * x_k, axis=1)
    h = jax.nn.relu(xs @ w1 + b1)
    return jax.nn.sigmoid(h @ w2 + b2)


if __name__ == "__main__":
    # Small, forward-consistent shapes.
    V = 32            # vocab size
    D = 32            # input_size (embedding dim)
    H = 32            # hidden_size
    O = 1             # output_size (must be 1 for the att * x_k broadcast)
    B, T = 2, 8       # batch, sequence length

    key = jax.random.PRNGKey(0)
    k_emb, k_wq, k_w1, k_b1, k_w2, k_b2, k_x = jax.random.split(key, 7)

    embeddings = jax.random.normal(k_emb, (V, D), dtype=jnp.float32)
    # Linear weights stored as (in_features, out_features) == nn.Linear.weight.T
    w_q = jax.random.normal(k_wq, (D, O), dtype=jnp.float32) * 0.1
    w1  = jax.random.normal(k_w1, (D, H), dtype=jnp.float32) * 0.1
    b1  = jax.random.normal(k_b1, (H,),   dtype=jnp.float32) * 0.1
    w2  = jax.random.normal(k_w2, (H, O), dtype=jnp.float32) * 0.1
    b2  = jax.random.normal(k_b2, (O,),   dtype=jnp.float32) * 0.1

    x_ids = jax.random.randint(k_x, (B, T), 0, V, dtype=jnp.int32)

    out = attention_simple_forward(x_ids, embeddings, w_q, w1, b1, w2, b2)
    out = jax.block_until_ready(out)

    ref = _reference(x_ids, embeddings, w_q, w1, b1, w2, b2)
    assert out.shape == (B, O) and out.dtype == jnp.float32
    # approx-reciprocal (EUP vrcp) in softmax/sigmoid -> slightly looser tol.
    assert jnp.allclose(out, ref, atol=5e-3, rtol=5e-3), float(jnp.max(jnp.abs(out - ref)))

    print("KERNEL_OK")
</pallas_src>

<mosaic_0001>
module attributes {stable_mosaic.version = 11 : i64} {
  func.func @attention_simple_kernel(%arg0: i32, %arg1: memref<8x8xi32, #tpu.memory_space<vmem>>, %arg2: memref<32x32xf32, #tpu.memory_space<vmem>>, %arg3: memref<1x32xf32, #tpu.memory_space<vmem>>, %arg4: memref<32x32xf32, #tpu.memory_space<vmem>>, %arg5: memref<1x32xf32, #tpu.memory_space<vmem>>, %arg6: memref<1x32xf32, #tpu.memory_space<vmem>>, %arg7: memref<1x1xf32, #tpu.memory_space<vmem>>, %arg8: memref<1x1x8xf32, #tpu.memory_space<vmem>>) attributes {dimension_semantics = [#tpu.dimension_semantics<parallel>], iteration_bounds = array<i64: 1>, scalar_prefetch = 0 : i64, scratch_operands = 0 : i64, tpu.core_type = #tpu.core_type<tc>, window_params = [{transform_indices = @transform_0, window_bounds = array<i64: 8, 8>}, {pipeline_mode = #tpu.pipeline_mode<synchronous>, transform_indices = @transform_1, window_bounds = array<i64: 32, 32>}, {pipeline_mode = #tpu.pipeline_mode<synchronous>, transform_indices = @transform_2, window_bounds = array<i64: 1, 32>}, {pipeline_mode = #tpu.pipeline_mode<synchronous>, transform_indices = @transform_3, window_bounds = array<i64: 32, 32>}, {pipeline_mode = #tpu.pipeline_mode<synchronous>, transform_indices = @transform_4, window_bounds = array<i64: 1, 32>}, {pipeline_mode = #tpu.pipeline_mode<synchronous>, transform_indices = @transform_5, window_bounds = array<i64: 1, 32>}, {pipeline_mode = #tpu.pipeline_mode<synchronous>, transform_indices = @transform_6, window_bounds = array<i64: 1, 1>}, {transform_indices = @transform_7, window_bounds = array<i64: 1, 1, 8>}]} {
    %c0 = arith.constant 0 : index
    %c0_0 = arith.constant 0 : index
    %0 = vector.load %arg1[%c0, %c0_0] : memref<8x8xi32, #tpu.memory_space<vmem>>, vector<8x8xi32>
    %c0_1 = arith.constant 0 : index
    %c0_2 = arith.constant 0 : index
    %1 = vector.load %arg2[%c0_1, %c0_2] : memref<32x32xf32, #tpu.memory_space<vmem>>, vector<32x32xf32>
    %c0_3 = arith.constant 0 : index
    %c0_4 = arith.constant 0 : index
    %2 = vector.load %arg3[%c0_3, %c0_4] : memref<1x32xf32, #tpu.memory_space<vmem>>, vector<1x32xf32>
    %cst = arith.constant dense<0.000000e+00> : vector<1x32xf32>
    %3 = tpu.matmul %2, %1, %cst {dimension_numbers = #tpu.dot_dimension_numbers<[1], [1], [0], [0], [0, 0, 1, 0], [], []>} : vector<1x32xf32>, vector<32x32xf32>, vector<1x32xf32> -> vector<1x32xf32>
    %4 = tpu.iota {dimensions = array<i32: 2>} : vector<8x8x32xi32>
    %5 = vector.shape_cast %0 : vector<8x8xi32> to vector<8x8x1xi32>
    %6 = vector.broadcast %5 : vector<8x8x1xi32> to vector<8x8x32xi32>
    %7 = arith.cmpi eq, %6, %4 : vector<8x8x32xi32>
    %8 = arith.extui %7 : vector<8x8x32xi1> to vector<8x8x32xi32>
    %9 = arith.sitofp %8 : vector<8x8x32xi32> to vector<8x8x32xf32>
    %10 = vector.shape_cast %3 : vector<1x32xf32> to vector<1x1x32xf32>
    %11 = vector.broadcast %10 : vector<1x1x32xf32> to vector<8x8x32xf32>
    %12 = arith.mulf %9, %11 : vector<8x8x32xf32>
    %cst_5 = arith.constant dense<0.000000e+00> : vector<8x8xf32>
    %13 = vector.multi_reduction <add>, %12, %cst_5 [2] : vector<8x8x32xf32> to vector<8x8xf32>
    %cst_6 = arith.constant dense<0xFF800000> : vector<8xf32>
    %14 = vector.multi_reduction <maximumf>, %13, %cst_6 [1] : vector<8x8xf32> to vector<8xf32>
    %15 = vector.shape_cast %14 : vector<8xf32> to vector<8x1xf32>
    %16 = vector.broadcast %15 : vector<8x1xf32> to vector<8x8xf32>
    %17 = arith.subf %13, %16 : vector<8x8xf32>
    %18 = math.exp %17 : vector<8x8xf32>
    %cst_7 = arith.constant dense<0.000000e+00> : vector<8xf32>
    %19 = vector.multi_reduction <add>, %18, %cst_7 [1] : vector<8x8xf32> to vector<8xf32>
    %20 = vector.shape_cast %19 : vector<8xf32> to vector<8x1xf32>
    %21 = tpu.reciprocal %20 {approx = true} : vector<8x1xf32> -> vector<8x1xf32>
    %22 = vector.broadcast %21 : vector<8x1xf32> to vector<8x8xf32>
    %23 = arith.mulf %18, %22 : vector<8x8xf32>
    %24 = vector.shape_cast %23 : vector<8x8xf32> to vector<8x8x1xf32>
    %25 = vector.broadcast %24 : vector<8x8x1xf32> to vector<8x8x32xf32>
    %26 = arith.mulf %9, %25 : vector<8x8x32xf32>
    %cst_8 = arith.constant dense<0.000000e+00> : vector<8x32xf32>
    %27 = vector.multi_reduction <add>, %26, %cst_8 [1] : vector<8x8x32xf32> to vector<8x32xf32>
    %cst_9 = arith.constant dense<0.000000e+00> : vector<8x32xf32>
    %28 = tpu.matmul %27, %1, %cst_9 {dimension_numbers = #tpu.dot_dimension_numbers<[1], [0], [0], [1], [0, 0, 1, 1], [], []>} : vector<8x32xf32>, vector<32x32xf32>, vector<8x32xf32> -> vector<8x32xf32>
    %c0_10 = arith.constant 0 : index
    %c0_11 = arith.constant 0 : index
    %29 = vector.load %arg4[%c0_10, %c0_11] : memref<32x32xf32, #tpu.memory_space<vmem>>, vector<32x32xf32>
    %cst_12 = arith.constant dense<0.000000e+00> : vector<8x32xf32>
    %30 = tpu.matmul %28, %29, %cst_12 {dimension_numbers = #tpu.dot_dimension_numbers<[1], [0], [0], [1], [0, 0, 1, 1], [], []>} : vector<8x32xf32>, vector<32x32xf32>, vector<8x32xf32> -> vector<8x32xf32>
    %c0_13 = arith.constant 0 : index
    %c0_14 = arith.constant 0 : index
    %31 = vector.load %arg5[%c0_13, %c0_14] : memref<1x32xf32, #tpu.memory_space<vmem>>, vector<1x32xf32>
    %32 = vector.broadcast %31 : vector<1x32xf32> to vector<8x32xf32>
    %33 = arith.addf %30, %32 : vector<8x32xf32>
    %cst_15 = arith.constant 0.000000e+00 : f32
    %34 = vector.broadcast %cst_15 : f32 to vector<8x32xf32>
    %35 = arith.maximumf %33, %34 : vector<8x32xf32>
    %c0_16 = arith.constant 0 : index
    %c0_17 = arith.constant 0 : index
    %36 = vector.load %arg6[%c0_16, %c0_17] : memref<1x32xf32, #tpu.memory_space<vmem>>, vector<1x32xf32>
    %cst_18 = arith.constant dense<0.000000e+00> : vector<1x8xf32>
    %37 = tpu.matmul %36, %35, %cst_18 {dimension_numbers = #tpu.dot_dimension_numbers<[1], [1], [0], [0], [0, 0, 1, 0], [], []>} : vector<1x32xf32>, vector<8x32xf32>, vector<1x8xf32> -> vector<1x8xf32>
    %c0_19 = arith.constant 0 : index
    %c0_20 = arith.constant 0 : index
    %38 = vector.load %arg7[%c0_19, %c0_20] : memref<1x1xf32, #tpu.memory_space<vmem>>, vector<1x1xf32>
    %39 = vector.broadcast %38 : vector<1x1xf32> to vector<1x8xf32>
    %40 = arith.addf %37, %39 : vector<1x8xf32>
    %cst_21 = arith.constant 0.000000e+00 : f32
    %41 = vector.broadcast %cst_21 : f32 to vector<1x8xf32>
    %42 = arith.subf %41, %40 : vector<1x8xf32>
    %43 = math.exp %42 : vector<1x8xf32>
    %cst_22 = arith.constant 1.000000e+00 : f32
    %44 = vector.broadcast %cst_22 : f32 to vector<1x8xf32>
    %45 = arith.addf %44, %43 : vector<1x8xf32>
    %46 = tpu.reciprocal %45 {approx = true} : vector<1x8xf32> -> vector<1x8xf32>
    %47 = vector.shape_cast %46 : vector<1x8xf32> to vector<1x1x8xf32>
    %c0_23 = arith.constant 0 : index
    %c0_24 = arith.constant 0 : index
    %c0_25 = arith.constant 0 : index
    %48 = vector.load %arg8[%c0_23, %c0_24, %c0_25] : memref<1x1x8xf32, #tpu.memory_space<vmem>>, vector<1x1x8xf32>
    tpu.vector_store %arg8[%c0_23, %c0_24, %c0_25], %47 {strides = array<i32>} : memref<1x1x8xf32, #tpu.memory_space<vmem>>, vector<1x1x8xf32>,
    return
  }
  func.func @transform_0(%arg0: i32) -> (i32, i32) {
    %c0_i32 = arith.constant 0 : i32
    %c0_i32_0 = arith.constant 0 : i32
    return %arg0, %c0_i32 : i32, i32
  }
  func.func @transform_1(%arg0: i32) -> (i32, i32) {
    %c0_i32 = arith.constant 0 : i32
    %c0_i32_0 = arith.constant 0 : i32
    %c0_i32_1 = arith.constant 0 : i32
    return %c0_i32, %c0_i32_0 : i32, i32
  }
  func.func @transform_2(%arg0: i32) -> (i32, i32) {
    %c0_i32 = arith.constant 0 : i32
    %c0_i32_0 = arith.constant 0 : i32
    %c0_i32_1 = arith.constant 0 : i32
    return %c0_i32, %c0_i32_0 : i32, i32
  }
  func.func @transform_3(%arg0: i32) -> (i32, i32) {
    %c0_i32 = arith.constant 0 : i32
    %c0_i32_0 = arith.constant 0 : i32
    %c0_i32_1 = arith.constant 0 : i32
    return %c0_i32, %c0_i32_0 : i32, i32
  }
  func.func @transform_4(%arg0: i32) -> (i32, i32) {
    %c0_i32 = arith.constant 0 : i32
    %c0_i32_0 = arith.constant 0 : i32
    %c0_i32_1 = arith.constant 0 : i32
    return %c0_i32, %c0_i32_0 : i32, i32
  }
  func.func @transform_5(%arg0: i32) -> (i32, i32) {
    %c0_i32 = arith.constant 0 : i32
    %c0_i32_0 = arith.constant 0 : i32
    %c0_i32_1 = arith.constant 0 : i32
    return %c0_i32, %c0_i32_0 : i32, i32
  }
  func.func @transform_6(%arg0: i32) -> (i32, i32) {
    %c0_i32 = arith.constant 0 : i32
    %c0_i32_0 = arith.constant 0 : i32
    %c0_i32_1 = arith.constant 0 : i32
    return %c0_i32, %c0_i32_0 : i32, i32
  }
  func.func @transform_7(%arg0: i32) -> (i32, i32, i32) {
    %c0_i32 = arith.constant 0 : i32
    %c0_i32_0 = arith.constant 0 : i32
    %c0_i32_1 = arith.constant 0 : i32
    return %arg0, %c0_i32, %c0_i32_0 : i32, i32, i32
  }
}

</mosaic_0001>

<llo_original>
// kernel: tpu_custom_call.1
$region0: #{tpu_custom_call.1}
  #allocation0 [shape = 'u32[]', space=smem, size = 0x4, offset = 0x4, fixed_abs, tag = 'smem constant byte address 0x4 - core index']
  #allocation1 [shape = 'u32[144,128]{1,0:T(1,128)}', space=vmem, size = 0x12000, scoped, tag = 'internal scratch']
  #allocation2 [shape = 'f32[1,1]{1,0:T(1,128)S(1)}', space=vmem, size = 0x200, scoped, tag = 'scoped memory for tpu_custom_call.1']
  %s0 = inlined_call_operand.hbm [shape: s32[8,8], index: 0, kind: input, shape index: {}]
  %s1 = inlined_call_operand.hbm [shape: f32[32,32], index: 1, kind: input, shape index: {}]
  %s2 = inlined_call_operand.vmem [shape: f32[1,32], index: 2, kind: input, shape index: {}]
  %s3 = inlined_call_operand.hbm [shape: f32[32,32], index: 3, kind: input, shape index: {}]
  %s4 = inlined_call_operand.vmem [shape: f32[1,32], index: 4, kind: input, shape index: {}]
  %s5 = inlined_call_operand.vmem [shape: f32[1,32], index: 5, kind: input, shape index: {}]
  %s6 = inlined_call_operand.<no memory space> [shape: f32[1,1], index: 6, kind: input, shape index: {}]
  %s7 = inlined_call_operand.hbm [shape: f32[1,1,8], index: 7, kind: output, shape index: {}]
  %s8 = sld [smem:[#allocation0]]
  $region50: #{tpu_custom_call.1} parent=0
    _
  %s10 = ssub.s32 1, %s8
  %s11 = scalar_select 0, %s10, %s8
  %v12 = vstv %s6
  %13 = vst [vmem:[#allocation2] sm:$0x1] %v12
  $region1: #{tpu_custom_call.1} parent=0
    #allocation3 [shape = 'u8[4096]{0}', space=vmem, size = 0x1000, scoped, tag = 'input window, operand 0, single buffered']
    #allocation4 [shape = 's32[1]{0}', space=sflag, size = 0x4, scoped, tag = 'scoped memory for tpu_custom_call.1']
    #allocation5 [shape = 's32[1]{0}', space=sflag, size = 0x4, scoped, tag = 'scoped memory for tpu_custom_call.1']
    #allocation6 [shape = 'u8[16384]{0}', space=vmem, size = 0x4000, scoped, tag = 'input window, operand 1, single buffered']
    #allocation7 [shape = 's32[1]{0}', space=sflag, size = 0x4, scoped, tag = 'scoped memory for tpu_custom_call.1']
    #allocation8 [shape = 'u8[16384]{0}', space=vmem, size = 0x4000, scoped, tag = 'input window, operand 3, single buffered']
    #allocation9 [shape = 'u8[512]{0}', space=vmem, size = 0x400, scoped, tag = 'output window, operand 0, single buffered']
    %14 = vsyncpa [#allocation4], 0
    %15 = vsyncpa [#allocation7], 0
    %16 = vsyncpa [#allocation5], 0
    // Predicated region
    $region2: #{tpu_custom_call.1} parent=1 // pred_check
      _
    $region3: #{tpu_custom_call.1} parent=1 // pred_check_branch
      %18 = sbr.rel (0) target = $region5
    $region4: #{tpu_custom_call.1} parent=1 // pred_region
      %s20 = ssub.s32 128, 128
      %21 = vsyncadd [#allocation4], %s20
      %s23 = sshll.u32 [#allocation3], 4
      %s24 = int_to_ptr.vmem [resolvable:$true] %s23
      %26 = dma.hbm_to_vmem [thread:$0]  %s0, 128, %s24, [#allocation4]
    $region5: #{tpu_custom_call.1} parent=1 // pred_fallthru
      _
    // Predicated region
    $region6: #{tpu_custom_call.1} parent=1 // pred_check
      _
    $region7: #{tpu_custom_call.1} parent=1 // pred_check_branch
      %28 = sbr.rel (0) target = $region9
    $region8: #{tpu_custom_call.1} parent=1 // pred_region
      %s30 = ssub.s32 512, 512
      %31 = vsyncadd [#allocation7], %s30
      %s32 = sshll.u32 [#allocation6], 4
      %s33 = int_to_ptr.vmem [resolvable:$true] %s32
      %38 = dma.hbm_to_vmem [thread:$0]  %s1, 512, %s33, [#allocation7], 128, 128, 8
    $region9: #{tpu_custom_call.1} parent=1 // pred_fallthru
      _
    // Predicated region
    $region10: #{tpu_custom_call.1} parent=1 // pred_check
      _
    $region11: #{tpu_custom_call.1} parent=1 // pred_check_branch
      %40 = sbr.rel (0) target = $region13
    $region12: #{tpu_custom_call.1} parent=1 // pred_region
      _
    $region13: #{tpu_custom_call.1} parent=1 // pred_fallthru
      _
    // Predicated region
    $region14: #{tpu_custom_call.1} parent=1 // pred_check
      _
    $region15: #{tpu_custom_call.1} parent=1 // pred_check_branch
      %42 = sbr.rel (0) target = $region17
    $region16: #{tpu_custom_call.1} parent=1 // pred_region
      %s44 = ssub.s32 512, 512
      %45 = vsyncadd [#allocation7], %s44
      %s46 = sshll.u32 [#allocation8], 4
      %s47 = int_to_ptr.vmem [resolvable:$true] %s46
      %52 = dma.hbm_to_vmem [thread:$0]  %s3, 512, %s47, [#allocation7], 128, 128, 8
    $region17: #{tpu_custom_call.1} parent=1 // pred_fallthru
      _
    // Predicated region
    $region18: #{tpu_custom_call.1} parent=1 // pred_check
      _
    $region19: #{tpu_custom_call.1} parent=1 // pred_check_branch
      %54 = sbr.rel (0) target = $region21
    $region20: #{tpu_custom_call.1} parent=1 // pred_region
      _
    $region21: #{tpu_custom_call.1} parent=1 // pred_fallthru
      _
    // Predicated region
    $region22: #{tpu_custom_call.1} parent=1 // pred_check
      _
    $region23: #{tpu_custom_call.1} parent=1 // pred_check_branch
      %56 = sbr.rel (0) target = $region25
    $region24: #{tpu_custom_call.1} parent=1 // pred_region
      _
    $region25: #{tpu_custom_call.1} parent=1 // pred_fallthru
      _
    // Predicated region
    $region26: #{tpu_custom_call.1} parent=1 // pred_check
      _
    $region27: #{tpu_custom_call.1} parent=1 // pred_check_branch
      %58 = sbr.rel (0) target = $region29
    $region28: #{tpu_custom_call.1} parent=1 // pred_region
      _
    $region29: #{tpu_custom_call.1} parent=1 // pred_fallthru
      _
    // Predicated region
    $region30: #{tpu_custom_call.1} parent=1 // pred_check
      _
    $region31: #{tpu_custom_call.1} parent=1 // pred_check_branch
      %60 = sbr.rel (0) target = $region33
    $region32: #{tpu_custom_call.1} parent=1 // pred_region
      %61 = dma.done [#allocation4], 128
    $region33: #{tpu_custom_call.1} parent=1 // pred_fallthru
      _
    // Predicated region
    $region34: #{tpu_custom_call.1} parent=1 // pred_check
      _
    $region35: #{tpu_custom_call.1} parent=1 // pred_check_branch
      %63 = sbr.rel (0) target = $region37
    $region36: #{tpu_custom_call.1} parent=1 // pred_region
      %64 = dma.done [#allocation7], 512
    $region37: #{tpu_custom_call.1} parent=1 // pred_fallthru
      _
    // Predicated region
    $region38: #{tpu_custom_call.1} parent=1 // pred_check
      _
    $region39: #{tpu_custom_call.1} parent=1 // pred_check_branch
      %66 = sbr.rel (0) target = $region41
    $region40: #{tpu_custom_call.1} parent=1 // pred_region
      %67 = dma.done [#allocation7], 512
    $region41: #{tpu_custom_call.1} parent=1 // pred_fallthru
      _
    %v68 = vld [vmem:[#allocation3] sm:$0xff]
    %v69 = vld [vmem:[#allocation6] sm:$0xff]
    %v70 = vld [vmem:[#allocation6 + $0x8] sm:$0xff]
    %v71 = vld [vmem:[#allocation6 + $0x10] sm:$0xff]
    %v72 = vld [vmem:[#allocation6 + $0x18] sm:$0xff]
    %v73 = vld [vmem:[%s2] sm:$0x1]
    %vm74 = vcmask 261120
    %v76 = vsel %vm74, %v73, 0
    %v79 = vsel %vm74, %v69, 0
    %v82 = vsel %vm74, %v70, 0
    %v85 = vsel %vm74, %v71, 0
    %v88 = vsel %vm74, %v72, 0
    %90 = vmatprep.subr.mxu0 0.0
    %91 = vmatpush1.xpose.msra.mxu0 0.0
    %92 = vmatprep.subr.mxu0 0.0
    %93 = vmatpush1.xpose.msra.mxu0 0.0
    %94 = vmatprep.subr.mxu0 0.0
    %95 = vmatpush1.xpose.msra.mxu0 0.0
    %96 = vmatprep.subr.mxu0 0.0
    %97 = vmatpush1.xpose.msra.mxu0 0.0
    %98 = vmatprep.subr.mxu0 0.0
    %99 = vmatpush1.xpose.msra.mxu0 0.0
    %100 = vmatprep.subr.mxu0 0.0
    %101 = vmatpush1.xpose.msra.mxu0 0.0
    %102 = vmatprep.subr.mxu0 0.0
    %103 = vmatpush1.xpose.msra.mxu0 0.0
    %104 = vmatprep.subr.mxu0 0.0
    %105 = vmatpush1.xpose.msra.mxu0 0.0
    %106 = vmatprep.subr.mxu0 0.0
    %107 = vmatpush1.xpose.msra.mxu0 0.0
    %108 = vmatprep.subr.mxu0 0.0
    %109 = vmatpush1.xpose.msra.mxu0 0.0
    %110 = vmatprep.subr.mxu0 0.0
    %111 = vmatpush1.xpose.msra.mxu0 0.0
    %112 = vmatprep.subr.mxu0 0.0
    %113 = vmatpush1.xpose.msra.mxu0 0.0
    %114 = vmatprep.subr.mxu0 0.0
    %115 = vmatpush1.xpose.msra.mxu0 %v88
    %116 = vmatprep.subr.mxu0 0.0
    %117 = vmatpush1.xpose.msra.mxu0 %v85
    %118 = vmatprep.subr.mxu0 0.0
    %119 = vmatpush1.xpose.msra.mxu0 %v82
    %120 = vmatprep.subr.mxu0 0.0
    %121 = vmatpush1.xpose.msra.mxu0 %v79
    %122 = vmatprep.subr.mxu0 0.0
    %123 = vmatpush2.xpose.msra.mxu0 0.0
    %124 = vmatprep.subr.mxu0 0.0
    %125 = vmatpush2.xpose.msra.mxu0 0.0
    %126 = vmatprep.subr.mxu0 0.0
    %127 = vmatpush2.xpose.msra.mxu0 0.0
    %128 = vmatprep.subr.mxu0 0.0
    %129 = vmatpush2.xpose.msra.mxu0 0.0
    %130 = vmatprep.subr.mxu0 0.0
    %131 = vmatpush2.xpose.msra.mxu0 0.0
    %132 = vmatprep.subr.mxu0 0.0
    %133 = vmatpush2.xpose.msra.mxu0 0.0
    %134 = vmatprep.subr.mxu0 0.0
    %135 = vmatpush2.xpose.msra.mxu0 0.0
    %136 = vmatprep.subr.mxu0 0.0
    %137 = vmatpush2.xpose.msra.mxu0 0.0
    %138 = vmatprep.subr.mxu0 0.0
    %139 = vmatpush2.xpose.msra.mxu0 0.0
    %140 = vmatprep.subr.mxu0 0.0
    %141 = vmatpush2.xpose.msra.mxu0 0.0
    %142 = vmatprep.subr.mxu0 0.0
    %143 = vmatpush2.xpose.msra.mxu0 0.0
    %144 = vmatprep.subr.mxu0 0.0
    %145 = vmatpush2.xpose.msra.mxu0 0.0
    %146 = vmatprep.subr.mxu0 0.0
    %147 = vmatpush2.xpose.msra.mxu0 0.0
    %148 = vmatprep.subr.mxu0 0.0
    %149 = vmatpush2.xpose.msra.mxu0 0.0
    %150 = vmatprep.subr.mxu0 0.0
    %151 = vmatpush2.xpose.msra.mxu0 0.0
    %152 = vmatprep.subr.mxu0 0.0
    %153 = vmatpush2.xpose.msra.mxu0 0.0
    %154 = vmatprep.mubr.f32.mxu0 0.0
    %155 = vmatmul.mubr.f32.gmra.mxu0 %v76
    %v156 = vpop.f32.mrf.mxu0
    %v157 = vadd.f32 0.0, %v156
    %v158 = vpop.f32.mrf.mxu0
    %159 = vdwg.mxu0
    %v160 = vlaneseq
    %v161 = vand.u32 %v160, 127
    %v162 = vlaneseq
    %v163 = vshrl.u32 %v162, 7
    %v164 = vsub.s32 0, %v163
    %v165 = vrot.slane %v68, %v164
    %167 = vbcast.lane.b32.xlu0 %v165, 256
    %v168 = vpop.permute.xlu0 %167
    %v169 = vlaneseq
    %v170 = vshrl.u32 %v169, 7
    %v171 = vsub.s32 1, %v170
    %v172 = vrot.slane %v68, %v171
    %174 = vbcast.lane.b32.xlu0 %v172, 256
    %v175 = vpop.permute.xlu0 %174
    %v176 = vlaneseq
    %v177 = vshrl.u32 %v176, 7
    %v178 = vsub.s32 2, %v177
    %v179 = vrot.slane %v68, %v178
    %181 = vbcast.lane.b32.xlu0 %v179, 256
    %v182 = vpop.permute.xlu0 %181
    %v183 = vlaneseq
    %v184 = vshrl.u32 %v183, 7
    %v185 = vsub.s32 3, %v184
    %v186 = vrot.slane %v68, %v185
    %188 = vbcast.lane.b32.xlu0 %v186, 256
    %v189 = vpop.permute.xlu0 %188
    %v190 = vlaneseq
    %v191 = vshrl.u32 %v190, 7
    %v192 = vsub.s32 4, %v191
    %v193 = vrot.slane %v68, %v192
    %195 = vbcast.lane.b32.xlu0 %v193, 256
    %v196 = vpop.permute.xlu0 %195
    %v197 = vlaneseq
    %v198 = vshrl.u32 %v197, 7
    %v199 = vsub.s32 5, %v198
    %v200 = vrot.slane %v68, %v199
    %202 = vbcast.lane.b32.xlu0 %v200, 256
    %v203 = vpop.permute.xlu0 %202
    %v204 = vlaneseq
    %v205 = vshrl.u32 %v204, 7
    %v206 = vsub.s32 6, %v205
    %v207 = vrot.slane %v68, %v206
    %209 = vbcast.lane.b32.xlu0 %v207, 256
    %v210 = vpop.permute.xlu0 %209
    %v211 = vlaneseq
    %v212 = vshrl.u32 %v211, 7
    %v213 = vsub.s32 7, %v212
    %v214 = vrot.slane %v68, %v213
    %216 = vbcast.lane.b32.xlu0 %v214, 256
    %v217 = vpop.permute.xlu0 %216
    %vm218 = vcmp.eq.s32.totalorder %v168, %v161
    %vm219 = vcmp.eq.s32.totalorder %v175, %v161
    %vm220 = vcmp.eq.s32.totalorder %v182, %v161
    %vm221 = vcmp.eq.s32.totalorder %v189, %v161
    %vm222 = vcmp.eq.s32.totalorder %v196, %v161
    %vm223 = vcmp.eq.s32.totalorder %v203, %v161
    %vm224 = vcmp.eq.s32.totalorder %v210, %v161
    %vm225 = vcmp.eq.s32.totalorder %v217, %v161
    %v226 = vsel %vm218, 1, 0
    %v227 = vsel %vm219, 1, 0
    %v228 = vsel %vm220, 1, 0
    %v229 = vsel %vm221, 1, 0
    %v230 = vsel %vm222, 1, 0
    %v231 = vsel %vm223, 1, 0
    %v232 = vsel %vm224, 1, 0
    %v233 = vsel %vm225, 1, 0
    %v234 = vcvt.s32.f32 %v226
    %v235 = vcvt.s32.f32 %v227
    %v236 = vcvt.s32.f32 %v228
    %v237 = vcvt.s32.f32 %v229
    %v238 = vcvt.s32.f32 %v230
    %v239 = vcvt.s32.f32 %v231
    %v240 = vcvt.s32.f32 %v232
    %v241 = vcvt.s32.f32 %v233
    %v242 = vlaneseq
    %v243 = vshrl.u32 %v242, 7
    %v244 = vsub.s32 0, %v243
    %v245 = vrot.slane %v157, %v244
    %v246 = vmul.f32 %v234, %v245
    %v247 = vmul.f32 %v235, %v245
    %v248 = vmul.f32 %v236, %v245
    %v249 = vmul.f32 %v237, %v245
    %v250 = vmul.f32 %v238, %v245
    %v251 = vmul.f32 %v239, %v245
    %v252 = vmul.f32 %v240, %v245
    %v253 = vmul.f32 %v241, %v245
    %v254 = vsel %vm74, %v246, 0.0
    %255 = vadd.xlane.f32.xlu0 %v254
    %v256 = vpop.xlane.xlu0 %255
    %v257 = vsel %vm74, %v247, 0.0
    %258 = vadd.xlane.f32.xlu0 %v257
    %v259 = vpop.xlane.xlu0 %258
    %v260 = vsel %vm74, %v248, 0.0
    %261 = vadd.xlane.f32.xlu0 %v260
    %v262 = vpop.xlane.xlu0 %261
    %v263 = vsel %vm74, %v249, 0.0
    %264 = vadd.xlane.f32.xlu0 %v263
    %v265 = vpop.xlane.xlu0 %264
    %v266 = vsel %vm74, %v250, 0.0
    %267 = vadd.xlane.f32.xlu0 %v266
    %v268 = vpop.xlane.xlu0 %267
    %v269 = vsel %vm74, %v251, 0.0
    %270 = vadd.xlane.f32.xlu0 %v269
    %v271 = vpop.xlane.xlu0 %270
    %v272 = vsel %vm74, %v252, 0.0
    %273 = vadd.xlane.f32.xlu0 %v272
    %v274 = vpop.xlane.xlu0 %273
    %v275 = vsel %vm74, %v253, 0.0
    %276 = vadd.xlane.f32.xlu0 %v275
    %v277 = vpop.xlane.xlu0 %276
    %v286 = vlaneseq
    %v287 = vshrl.u32 %v286, 7
    %v288 = vsub.s32 %v161, %v287
    %v289 = vrot.slane %v256, %v288
    %v290 = vlaneseq
    %v291 = vshrl.u32 %v290, 7
    %v292 = vsub.s32 %v161, %v291
    %v293 = vrot.slane %v259, %v292
    %v294 = vlaneseq
    %v295 = vshrl.u32 %v294, 7
    %v296 = vsub.s32 %v161, %v295
    %v297 = vrot.slane %v262, %v296
    %v298 = vlaneseq
    %v299 = vshrl.u32 %v298, 7
    %v300 = vsub.s32 %v161, %v299
    %v301 = vrot.slane %v265, %v300
    %v302 = vlaneseq
    %v303 = vshrl.u32 %v302, 7
    %v304 = vsub.s32 %v161, %v303
    %v305 = vrot.slane %v268, %v304
    %v306 = vlaneseq
    %v307 = vshrl.u32 %v306, 7
    %v308 = vsub.s32 %v161, %v307
    %v309 = vrot.slane %v271, %v308
    %v310 = vlaneseq
    %v311 = vshrl.u32 %v310, 7
    %v312 = vsub.s32 %v161, %v311
    %v313 = vrot.slane %v274, %v312
    %v314 = vlaneseq
    %v315 = vshrl.u32 %v314, 7
    %v316 = vsub.s32 %v161, %v315
    %v317 = vrot.slane %v277, %v316
    %vm318 = vcmask 1041409
    %v319 = vsel %vm318, %v293, %v289
    %vm320 = vcmask 1042434
    %v321 = vsel %vm320, %v297, %v319
    %vm322 = vcmask 1043459
    %v323 = vsel %vm322, %v301, %v321
    %vm324 = vcmask 1044484
    %v325 = vsel %vm324, %v305, %v323
    %vm326 = vcmask 1045509
    %v327 = vsel %vm326, %v309, %v325
    %vm328 = vcmask 1046534
    %v329 = vsel %vm328, %v313, %v327
    %vm330 = vcmask 1047559
    %v331 = vsel %vm330, %v317, %v329
    %vm333 = vcmask 64512
    %v334 = vsel %vm333, %v331, -inf
    %335 = vmax.xlane.f32.xlu0 %v334
    %v336 = vpop.xlane.xlu0 %335
    %v338 = vlaneseq
    %v339 = vshrl.u32 %v338, 7
    %v340 = vsub.s32 0, %v339
    %v341 = vrot.slane %v336, %v340
    %v342 = vlaneseq
    %v343 = vshrl.u32 %v342, 7
    %v344 = vsub.s32 1, %v343
    %v345 = vrot.slane %v336, %v344
    %v346 = vlaneseq
    %v347 = vshrl.u32 %v346, 7
    %v348 = vsub.s32 2, %v347
    %v349 = vrot.slane %v336, %v348
    %v350 = vlaneseq
    %v351 = vshrl.u32 %v350, 7
    %v352 = vsub.s32 3, %v351
    %v353 = vrot.slane %v336, %v352
    %v354 = vlaneseq
    %v355 = vshrl.u32 %v354, 7
    %v356 = vsub.s32 4, %v355
    %v357 = vrot.slane %v336, %v356
    %v358 = vlaneseq
    %v359 = vshrl.u32 %v358, 7
    %v360 = vsub.s32 5, %v359
    %v361 = vrot.slane %v336, %v360
    %v362 = vlaneseq
    %v363 = vshrl.u32 %v362, 7
    %v364 = vsub.s32 6, %v363
    %v365 = vrot.slane %v336, %v364
    %v366 = vlaneseq
    %v367 = vshrl.u32 %v366, 7
    %v368 = vsub.s32 7, %v367
    %v369 = vrot.slane %v336, %v368
    %v378 = vsub.f32 %v256, %v341
    %v379 = vsub.f32 %v259, %v345
    %v380 = vsub.f32 %v262, %v349
    %v381 = vsub.f32 %v265, %v353
    %v382 = vsub.f32 %v268, %v357
    %v383 = vsub.f32 %v271, %v361
    %v384 = vsub.f32 %v274, %v365
    %v385 = vsub.f32 %v277, %v369
    %v386 = vmul.f32 %v378, 1.442695
    %v387 = vpow.pop %v386
    %v388 = vmul.f32 %v379, 1.442695
    %v389 = vpow.pop %v388
    %v390 = vmul.f32 %v380, 1.442695
    %v391 = vpow.pop %v390
    %v392 = vmul.f32 %v381, 1.442695
    %v393 = vpow.pop %v392
    %v394 = vmul.f32 %v382, 1.442695
    %v395 = vpow.pop %v394
    %v396 = vmul.f32 %v383, 1.442695
    %v397 = vpow.pop %v396
    %v398 = vmul.f32 %v384, 1.442695
    %v399 = vpow.pop %v398
    %v400 = vmul.f32 %v385, 1.442695
    %v401 = vpow.pop %v400
    %410 = vset.pattern.permute.xlu0 0
    %411 = vperm.xlu0 %410, %v387
    %v412 = vpop.permute.xlu0 %411
    %413 = vset.pattern.permute.xlu0 0
    %414 = vperm.xlu0 %413, %v389
    %v415 = vpop.permute.xlu0 %414
    %416 = vset.pattern.permute.xlu0 0
    %417 = vperm.xlu0 %416, %v391
    %v418 = vpop.permute.xlu0 %417
    %419 = vset.pattern.permute.xlu0 0
    %420 = vperm.xlu0 %419, %v393
    %v421 = vpop.permute.xlu0 %420
    %422 = vset.pattern.permute.xlu0 0
    %423 = vperm.xlu0 %422, %v395
    %v424 = vpop.permute.xlu0 %423
    %425 = vset.pattern.permute.xlu0 0
    %426 = vperm.xlu0 %425, %v397
    %v427 = vpop.permute.xlu0 %426
    %428 = vset.pattern.permute.xlu0 0
    %429 = vperm.xlu0 %428, %v399
    %v430 = vpop.permute.xlu0 %429
    %431 = vset.pattern.permute.xlu0 0
    %432 = vperm.xlu0 %431, %v401
    %v433 = vpop.permute.xlu0 %432
    %v434 = vlaneseq
    %v435 = vshrl.u32 %v434, 7
    %v436 = vsub.s32 %v161, %v435
    %v437 = vrot.slane %v412, %v436
    %v438 = vlaneseq
    %v439 = vshrl.u32 %v438, 7
    %v440 = vsub.s32 %v161, %v439
    %v441 = vrot.slane %v415, %v440
    %v442 = vlaneseq
    %v443 = vshrl.u32 %v442, 7
    %v444 = vsub.s32 %v161, %v443
    %v445 = vrot.slane %v418, %v444
    %v446 = vlaneseq
    %v447 = vshrl.u32 %v446, 7
    %v448 = vsub.s32 %v161, %v447
    %v449 = vrot.slane %v421, %v448
    %v450 = vlaneseq
    %v451 = vshrl.u32 %v450, 7
    %v452 = vsub.s32 %v161, %v451
    %v453 = vrot.slane %v424, %v452
    %v454 = vlaneseq
    %v455 = vshrl.u32 %v454, 7
    %v456 = vsub.s32 %v161, %v455
    %v457 = vrot.slane %v427, %v456
    %v458 = vlaneseq
    %v459 = vshrl.u32 %v458, 7
    %v460 = vsub.s32 %v161, %v459
    %v461 = vrot.slane %v430, %v460
    %v462 = vlaneseq
    %v463 = vshrl.u32 %v462, 7
    %v464 = vsub.s32 %v161, %v463
    %v465 = vrot.slane %v433, %v464
    %v466 = vsel %vm318, %v441, %v437
    %v467 = vsel %vm320, %v445, %v466
    %v468 = vsel %vm322, %v449, %v467
    %v469 = vsel %vm324, %v453, %v468
    %v470 = vsel %vm326, %v457, %v469
    %v471 = vsel %vm328, %v461, %v470
    %v472 = vsel %vm330, %v465, %v471
    %v474 = vsel %vm333, %v472, 0.0
    %475 = vadd.xlane.f32.xlu0 %v474
    %v476 = vpop.xlane.xlu0 %475
    %v477 = vrcp.pop %v476
    %v479 = vlaneseq
    %v480 = vshrl.u32 %v479, 7
    %v481 = vsub.s32 0, %v480
    %v482 = vrot.slane %v477, %v481
    %v483 = vlaneseq
    %v484 = vshrl.u32 %v483, 7
    %v485 = vsub.s32 1, %v484
    %v486 = vrot.slane %v477, %v485
    %v487 = vlaneseq
    %v488 = vshrl.u32 %v487, 7
    %v489 = vsub.s32 2, %v488
    %v490 = vrot.slane %v477, %v489
    %v491 = vlaneseq
    %v492 = vshrl.u32 %v491, 7
    %v493 = vsub.s32 3, %v492
    %v494 = vrot.slane %v477, %v493
    %v495 = vlaneseq
    %v496 = vshrl.u32 %v495, 7
    %v497 = vsub.s32 4, %v496
    %v498 = vrot.slane %v477, %v497
    %v499 = vlaneseq
    %v500 = vshrl.u32 %v499, 7
    %v501 = vsub.s32 5, %v500
    %v502 = vrot.slane %v477, %v501
    %v503 = vlaneseq
    %v504 = vshrl.u32 %v503, 7
    %v505 = vsub.s32 6, %v504
    %v506 = vrot.slane %v477, %v505
    %v507 = vlaneseq
    %v508 = vshrl.u32 %v507, 7
    %v509 = vsub.s32 7, %v508
    %v510 = vrot.slane %v477, %v509
    %v519 = vmul.f32 %v387, %v482
    %v520 = vmul.f32 %v389, %v486
    %v521 = vmul.f32 %v391, %v490
    %v522 = vmul.f32 %v393, %v494
    %v523 = vmul.f32 %v395, %v498
    %v524 = vmul.f32 %v397, %v502
    %v525 = vmul.f32 %v399, %v506
    %v526 = vmul.f32 %v401, %v510
    %528 = vset.pattern.permute.xlu0 0
    %529 = vperm.xlu0 %528, %v519
    %v530 = vpop.permute.xlu0 %529
    %533 = vset.pattern.permute.xlu0 0
    %534 = vperm.xlu0 %533, %v520
    %v535 = vpop.permute.xlu0 %534
    %538 = vset.pattern.permute.xlu0 0
    %539 = vperm.xlu0 %538, %v521
    %v540 = vpop.permute.xlu0 %539
    %543 = vset.pattern.permute.xlu0 0
    %544 = vperm.xlu0 %543, %v522
    %v545 = vpop.permute.xlu0 %544
    %548 = vset.pattern.permute.xlu0 0
    %549 = vperm.xlu0 %548, %v523
    %v550 = vpop.permute.xlu0 %549
    %553 = vset.pattern.permute.xlu0 0
    %554 = vperm.xlu0 %553, %v524
    %v555 = vpop.permute.xlu0 %554
    %558 = vset.pattern.permute.xlu0 0
    %559 = vperm.xlu0 %558, %v525
    %v560 = vpop.permute.xlu0 %559
    %563 = vset.pattern.permute.xlu0 0
    %564 = vperm.xlu0 %563, %v526
    %v565 = vpop.permute.xlu0 %564
    %v567 = vmul.f32 %v234, %v530
    %v568 = vmul.f32 %v235, %v535
    %v569 = vmul.f32 %v236, %v540
    %v570 = vmul.f32 %v237, %v545
    %v571 = vmul.f32 %v238, %v550
    %v572 = vmul.f32 %v239, %v555
    %v573 = vmul.f32 %v240, %v560
    %v574 = vmul.f32 %v241, %v565
    %v575 = vsel %vm74, %v567, 0.0
    %v576 = vrot.slane %v575, 4
    %v577 = vadd.f32 %v575, %v576
    %v578 = vrot.slane %v577, 2
    %v579 = vadd.f32 %v577, %v578
    %v580 = vrot.slane %v579, 1
    %v581 = vadd.f32 %v579, %v580
    %v582 = vsel %vm74, %v568, 0.0
    %v583 = vrot.slane %v582, 4
    %v584 = vadd.f32 %v582, %v583
    %v585 = vrot.slane %v584, 2
    %v586 = vadd.f32 %v584, %v585
    %v587 = vrot.slane %v586, 1
    %v588 = vadd.f32 %v586, %v587
    %v589 = vsel %vm74, %v569, 0.0
    %v590 = vrot.slane %v589, 4
    %v591 = vadd.f32 %v589, %v590
    %v592 = vrot.slane %v591, 2
    %v593 = vadd.f32 %v591, %v592
    %v594 = vrot.slane %v593, 1
    %v595 = vadd.f32 %v593, %v594
    %v596 = vsel %vm74, %v570, 0.0
    %v597 = vrot.slane %v596, 4
    %v598 = vadd.f32 %v596, %v597
    %v599 = vrot.slane %v598, 2
    %v600 = vadd.f32 %v598, %v599
    %v601 = vrot.slane %v600, 1
    %v602 = vadd.f32 %v600, %v601
    %v603 = vsel %vm74, %v571, 0.0
    %v604 = vrot.slane %v603, 4
    %v605 = vadd.f32 %v603, %v604
    %v606 = vrot.slane %v605, 2
    %v607 = vadd.f32 %v605, %v606
    %v608 = vrot.slane %v607, 1
    %v609 = vadd.f32 %v607, %v608
    %v610 = vsel %vm74, %v572, 0.0
    %v611 = vrot.slane %v610, 4
    %v612 = vadd.f32 %v610, %v611
    %v613 = vrot.slane %v612, 2
    %v614 = vadd.f32 %v612, %v613
    %v615 = vrot.slane %v614, 1
    %v616 = vadd.f32 %v614, %v615
    %v617 = vsel %vm74, %v573, 0.0
    %v618 = vrot.slane %v617, 4
    %v619 = vadd.f32 %v617, %v618
    %v620 = vrot.slane %v619, 2
    %v621 = vadd.f32 %v619, %v620
    %v622 = vrot.slane %v621, 1
    %v623 = vadd.f32 %v621, %v622
    %v624 = vsel %vm74, %v574, 0.0
    %v625 = vrot.slane %v624, 4
    %v626 = vadd.f32 %v624, %v625
    %v627 = vrot.slane %v626, 2
    %v628 = vadd.f32 %v626, %v627
    %v629 = vrot.slane %v628, 1
    %v630 = vadd.f32 %v628, %v629
    %v639 = vsel %vm318, %v588, %v581
    %v640 = vsel %vm320, %v595, %v639
    %v641 = vsel %vm322, %v602, %v640
    %v642 = vsel %vm324, %v609, %v641
    %v643 = vsel %vm326, %v616, %v642
    %v644 = vsel %vm328, %v623, %v643
    %v645 = vsel %vm330, %v630, %v644
    %v646 = vsel %vm74, %v645, 0
    %648 = vmatprep.subr.mxu0 0.0
    %649 = vmatpush1.msra.mxu0 0.0
    %650 = vmatprep.subr.mxu0 0.0
    %651 = vmatpush1.msra.mxu0 0.0
    %652 = vmatprep.subr.mxu0 0.0
    %653 = vmatpush1.msra.mxu0 0.0
    %654 = vmatprep.subr.mxu0 0.0
    %655 = vmatpush1.msra.mxu0 0.0
    %656 = vmatprep.subr.mxu0 0.0
    %657 = vmatpush1.msra.mxu0 0.0
    %658 = vmatprep.subr.mxu0 0.0
    %659 = vmatpush1.msra.mxu0 0.0
    %660 = vmatprep.subr.mxu0 0.0
    %661 = vmatpush1.msra.mxu0 0.0
    %662 = vmatprep.subr.mxu0 0.0
    %663 = vmatpush1.msra.mxu0 0.0
    %664 = vmatprep.subr.mxu0 0.0
    %665 = vmatpush1.msra.mxu0 0.0
    %666 = vmatprep.subr.mxu0 0.0
    %667 = vmatpush1.msra.mxu0 0.0
    %668 = vmatprep.subr.mxu0 0.0
    %669 = vmatpush1.msra.mxu0 0.0
    %670 = vmatprep.subr.mxu0 0.0
    %671 = vmatpush1.msra.mxu0 0.0
    %672 = vmatprep.subr.mxu0 0.0
    %673 = vmatpush1.msra.mxu0 %v72
    %674 = vmatprep.subr.mxu0 0.0
    %675 = vmatpush1.msra.mxu0 %v71
    %676 = vmatprep.subr.mxu0 0.0
    %677 = vmatpush1.msra.mxu0 %v70
    %678 = vmatprep.subr.mxu0 0.0
    %679 = vmatpush1.msra.mxu0 %v69
    %680 = vmatprep.subr.mxu0 0.0
    %681 = vmatpush2.msra.mxu0 0.0
    %682 = vmatprep.subr.mxu0 0.0
    %683 = vmatpush2.msra.mxu0 0.0
    %684 = vmatprep.subr.mxu0 0.0
    %685 = vmatpush2.msra.mxu0 0.0
    %686 = vmatprep.subr.mxu0 0.0
    %687 = vmatpush2.msra.mxu0 0.0
    %688 = vmatprep.subr.mxu0 0.0
    %689 = vmatpush2.msra.mxu0 0.0
    %690 = vmatprep.subr.mxu0 0.0
    %691 = vmatpush2.msra.mxu0 0.0
    %692 = vmatprep.subr.mxu0 0.0
    %693 = vmatpush2.msra.mxu0 0.0
    %694 = vmatprep.subr.mxu0 0.0
    %695 = vmatpush2.msra.mxu0 0.0
    %696 = vmatprep.subr.mxu0 0.0
    %697 = vmatpush2.msra.mxu0 0.0
    %698 = vmatprep.subr.mxu0 0.0
    %699 = vmatpush2.msra.mxu0 0.0
    %700 = vmatprep.subr.mxu0 0.0
    %701 = vmatpush2.msra.mxu0 0.0
    %702 = vmatprep.subr.mxu0 0.0
    %703 = vmatpush2.msra.mxu0 0.0
    %704 = vmatprep.subr.mxu0 0.0
    %705 = vmatpush2.msra.mxu0 0.0
    %706 = vmatprep.subr.mxu0 0.0
    %707 = vmatpush2.msra.mxu0 0.0
    %708 = vmatprep.subr.mxu0 0.0
    %709 = vmatpush2.msra.mxu0 0.0
    %710 = vmatprep.subr.mxu0 0.0
    %711 = vmatpush2.msra.mxu0 0.0
    %712 = vmatprep.mubr.f32.mxu0 0.0
    %713 = vmatmul.mubr.f32.gmra.mxu0 %v646
    %v714 = vpop.f32.mrf.mxu0
    %v715 = vadd.f32 0.0, %v714
    %v716 = vpop.f32.mrf.mxu0
    %717 = vdwg.mxu0
    %v718 = vld [vmem:[#allocation8] sm:$0xff]
    %v719 = vld [vmem:[#allocation8 + $0x8] sm:$0xff]
    %v720 = vld [vmem:[#allocation8 + $0x10] sm:$0xff]
    %v721 = vld [vmem:[#allocation8 + $0x18] sm:$0xff]
    %v722 = vld [vmem:[%s4] sm:$0x1]
    %v724 = vlaneseq
    %v725 = vshrl.u32 %v724, 7
    %v726 = vsub.s32 0, %v725
    %v727 = vrot.slane %v722, %v726
    %v730 = vsel %vm74, %v715, 0
    %732 = vmatprep.subr.mxu0 0.0
    %733 = vmatpush1.msra.mxu0 0.0
    %734 = vmatprep.subr.mxu0 0.0
    %735 = vmatpush1.msra.mxu0 0.0
    %736 = vmatprep.subr.mxu0 0.0
    %737 = vmatpush1.msra.mxu0 0.0
    %738 = vmatprep.subr.mxu0 0.0
    %739 = vmatpush1.msra.mxu0 0.0
    %740 = vmatprep.subr.mxu0 0.0
    %741 = vmatpush1.msra.mxu0 0.0
    %742 = vmatprep.subr.mxu0 0.0
    %743 = vmatpush1.msra.mxu0 0.0
    %744 = vmatprep.subr.mxu0 0.0
    %745 = vmatpush1.msra.mxu0 0.0
    %746 = vmatprep.subr.mxu0 0.0
    %747 = vmatpush1.msra.mxu0 0.0
    %748 = vmatprep.subr.mxu0 0.0
    %749 = vmatpush1.msra.mxu0 0.0
    %750 = vmatprep.subr.mxu0 0.0
    %751 = vmatpush1.msra.mxu0 0.0
    %752 = vmatprep.subr.mxu0 0.0
    %753 = vmatpush1.msra.mxu0 0.0
    %754 = vmatprep.subr.mxu0 0.0
    %755 = vmatpush1.msra.mxu0 0.0
    %756 = vmatprep.subr.mxu0 0.0
    %757 = vmatpush1.msra.mxu0 %v721
    %758 = vmatprep.subr.mxu0 0.0
    %759 = vmatpush1.msra.mxu0 %v720
    %760 = vmatprep.subr.mxu0 0.0
    %761 = vmatpush1.msra.mxu0 %v719
    %762 = vmatprep.subr.mxu0 0.0
    %763 = vmatpush1.msra.mxu0 %v718
    %764 = vmatprep.subr.mxu0 0.0
    %765 = vmatpush2.msra.mxu0 0.0
    %766 = vmatprep.subr.mxu0 0.0
    %767 = vmatpush2.msra.mxu0 0.0
    %768 = vmatprep.subr.mxu0 0.0
    %769 = vmatpush2.msra.mxu0 0.0
    %770 = vmatprep.subr.mxu0 0.0
    %771 = vmatpush2.msra.mxu0 0.0
    %772 = vmatprep.subr.mxu0 0.0
    %773 = vmatpush2.msra.mxu0 0.0
    %774 = vmatprep.subr.mxu0 0.0
    %775 = vmatpush2.msra.mxu0 0.0
    %776 = vmatprep.subr.mxu0 0.0
    %777 = vmatpush2.msra.mxu0 0.0
    %778 = vmatprep.subr.mxu0 0.0
    %779 = vmatpush2.msra.mxu0 0.0
    %780 = vmatprep.subr.mxu0 0.0
    %781 = vmatpush2.msra.mxu0 0.0
    %782 = vmatprep.subr.mxu0 0.0
    %783 = vmatpush2.msra.mxu0 0.0
    %784 = vmatprep.subr.mxu0 0.0
    %785 = vmatpush2.msra.mxu0 0.0
    %786 = vmatprep.subr.mxu0 0.0
    %787 = vmatpush2.msra.mxu0 0.0
    %788 = vmatprep.subr.mxu0 0.0
    %789 = vmatpush2.msra.mxu0 0.0
    %790 = vmatprep.subr.mxu0 0.0
    %791 = vmatpush2.msra.mxu0 0.0
    %792 = vmatprep.subr.mxu0 0.0
    %793 = vmatpush2.msra.mxu0 0.0
    %794 = vmatprep.subr.mxu0 0.0
    %795 = vmatpush2.msra.mxu0 0.0
    %796 = vmatprep.mubr.f32.mxu0 0.0
    %797 = vmatmul.mubr.f32.gmra.mxu0 %v730
    %v798 = vpop.f32.mrf.mxu0
    %v799 = vadd.f32 %v727, %v798
    %v800 = vpop.f32.mrf.mxu0
    %801 = vdwg.mxu0
    %v802 = vmax.f32 %v799, 0.0
    %v803 = vld [vmem:[%s5] sm:$0x1]
    %v804 = vld [vmem:[#allocation2] sm:$0x1]
    %806 = vset.pattern.permute.xlu0 0
    %807 = vperm.xlu0 %806, %v804
    %v808 = vpop.permute.xlu0 %807
    %v810 = vlaneseq
    %v811 = vshrl.u32 %v810, 7
    %v812 = vsub.s32 0, %v811
    %v813 = vrot.slane %v808, %v812
    %v815 = vsel %vm74, %v803, 0
    %v818 = vsel %vm74, %v802, 0
    %820 = vmatprep.subr.mxu0 0.0
    %821 = vmatpush1.xpose.msra.mxu0 0.0
    %822 = vmatprep.subr.mxu0 0.0
    %823 = vmatpush1.xpose.msra.mxu0 0.0
    %824 = vmatprep.subr.mxu0 0.0
    %825 = vmatpush1.xpose.msra.mxu0 0.0
    %826 = vmatprep.subr.mxu0 0.0
    %827 = vmatpush1.xpose.msra.mxu0 0.0
    %828 = vmatprep.subr.mxu0 0.0
    %829 = vmatpush1.xpose.msra.mxu0 0.0
    %830 = vmatprep.subr.mxu0 0.0
    %831 = vmatpush1.xpose.msra.mxu0 0.0
    %832 = vmatprep.subr.mxu0 0.0
    %833 = vmatpush1.xpose.msra.mxu0 0.0
    %834 = vmatprep.subr.mxu0 0.0
    %835 = vmatpush1.xpose.msra.mxu0 0.0
    %836 = vmatprep.subr.mxu0 0.0
    %837 = vmatpush1.xpose.msra.mxu0 0.0
    %838 = vmatprep.subr.mxu0 0.0
    %839 = vmatpush1.xpose.msra.mxu0 0.0
    %840 = vmatprep.subr.mxu0 0.0
    %841 = vmatpush1.xpose.msra.mxu0 0.0
    %842 = vmatprep.subr.mxu0 0.0
    %843 = vmatpush1.xpose.msra.mxu0 0.0
    %844 = vmatprep.subr.mxu0 0.0
    %845 = vmatpush1.xpose.msra.mxu0 0.0
    %846 = vmatprep.subr.mxu0 0.0
    %847 = vmatpush1.xpose.msra.mxu0 0.0
    %848 = vmatprep.subr.mxu0 0.0
    %849 = vmatpush1.xpose.msra.mxu0 0.0
    %850 = vmatprep.subr.mxu0 0.0
    %851 = vmatpush1.xpose.msra.mxu0 %v818
    %852 = vmatprep.subr.mxu0 0.0
    %853 = vmatpush2.xpose.msra.mxu0 0.0
    %854 = vmatprep.subr.mxu0 0.0
    %855 = vmatpush2.xpose.msra.mxu0 0.0
    %856 = vmatprep.subr.mxu0 0.0
    %857 = vmatpush2.xpose.msra.mxu0 0.0
    %858 = vmatprep.subr.mxu0 0.0
    %859 = vmatpush2.xpose.msra.mxu0 0.0
    %860 = vmatprep.subr.mxu0 0.0
    %861 = vmatpush2.xpose.msra.mxu0 0.0
    %862 = vmatprep.subr.mxu0 0.0
    %863 = vmatpush2.xpose.msra.mxu0 0.0
    %864 = vmatprep.subr.mxu0 0.0
    %865 = vmatpush2.xpose.msra.mxu0 0.0
    %866 = vmatprep.subr.mxu0 0.0
    %867 = vmatpush2.xpose.msra.mxu0 0.0
    %868 = vmatprep.subr.mxu0 0.0
    %869 = vmatpush2.xpose.msra.mxu0 0.0
    %870 = vmatprep.subr.mxu0 0.0
    %871 = vmatpush2.xpose.msra.mxu0 0.0
    %872 = vmatprep.subr.mxu0 0.0
    %873 = vmatpush2.xpose.msra.mxu0 0.0
    %874 = vmatprep.subr.mxu0 0.0
    %875 = vmatpush2.xpose.msra.mxu0 0.0
    %876 = vmatprep.subr.mxu0 0.0
    %877 = vmatpush2.xpose.msra.mxu0 0.0
    %878 = vmatprep.subr.mxu0 0.0
    %879 = vmatpush2.xpose.msra.mxu0 0.0
    %880 = vmatprep.subr.mxu0 0.0
    %881 = vmatpush2.xpose.msra.mxu0 0.0
    %882 = vmatprep.subr.mxu0 0.0
    %883 = vmatpush2.xpose.msra.mxu0 0.0
    %884 = vmatprep.mubr.f32.mxu0 0.0
    %885 = vmatmul.mubr.f32.gmra.mxu0 %v815
    %v886 = vpop.f32.mrf.mxu0
    %v887 = vadd.f32 %v813, %v886
    %v888 = vpop.f32.mrf.mxu0
    %889 = vdwg.mxu0
    %v890 = vsub.f32 0.0, %v887
    %v891 = vmul.f32 %v890, 1.442695
    %v892 = vpow.pop %v891
    %v893 = vadd.f32 %v892, 1.0
    %v894 = vrcp.pop %v893
    %vm895 = vcmask 57344
    %896 = vst.msk [vmem:[#allocation9] sm:$0x1] %vm895, %v894
    // Predicated region
    $region42: #{tpu_custom_call.1} parent=1 // pred_check
      _
    $region43: #{tpu_custom_call.1} parent=1 // pred_check_branch
      %898 = sbr.rel (0) target = $region45
    $region44: #{tpu_custom_call.1} parent=1 // pred_region
      %s900 = ssub.s32 16, 16
      %901 = vsyncadd [#allocation5], %s900
      %s903 = sshll.u32 [#allocation9], 4
      %s904 = int_to_ptr.vmem [resolvable:$true] %s903
      %906 = dma.vmem_to_hbm [thread:$0]  %s904, 16, %s7, [#allocation5]
    $region45: #{tpu_custom_call.1} parent=1 // pred_fallthru
      _
    // Predicated region
    $region46: #{tpu_custom_call.1} parent=1 // pred_check
      _
    $region47: #{tpu_custom_call.1} parent=1 // pred_check_branch
      %908 = sbr.rel (0) target = $region49
    $region48: #{tpu_custom_call.1} parent=1 // pred_region
      %909 = dma.done [#allocation5], 16
    $region49: #{tpu_custom_call.1} parent=1 // pred_fallthru
      _
    %910 = vsyncpa [#allocation4], 1
    %911 = vsyncpa [#allocation7], 1
    %912 = vsyncpa [#allocation5], 1

</llo_original>
